<compile_context>
chip_gen: v7x
topology: tpu7x:2x2x1
jax: 0.10.0
libtpu: 0.0.40
codegen_flags: <defaults>
</compile_context>

<pallas_src>
import jax
import jax.numpy as jnp
from jax.experimental import pallas as pl
from jax.experimental.pallas import tpu as pltpu

BN_EPS = 1e-5


def _mlp_kernel(x_ref,
                w1_ref, b1_ref,
                w2_ref, b2_ref,
                w3_ref, b3_ref,
                w4_ref, b4_ref,
                out_ref):
    # Matmul-operand dtype (f32 or bf16); accumulation is always f32.
    cdt = w1_ref.dtype
    x = x_ref[...].astype(cdt)          # in-kernel cast: no extra HBM pass over x

    # fc1 (+ folded bn1) -> relu
    h = jnp.dot(x, w1_ref[...], preferred_element_type=jnp.float32)
    h = jnp.maximum(h + b1_ref[...], 0.0)

    # fc2 (+ folded bn2) -> relu
    h = jnp.dot(h.astype(cdt), w2_ref[...], preferred_element_type=jnp.float32)
    h = jnp.maximum(h + b2_ref[...], 0.0)

    # fc3 -> relu
    h = jnp.dot(h.astype(cdt), w3_ref[...], preferred_element_type=jnp.float32)
    h = jnp.maximum(h + b3_ref[...], 0.0)          # (block_b, 64), f32

    # fc4, lane-packed: (1, 64) . (block_b, 64)^T -> (1, block_b).
    # "NT" dot_general (contract both operands on their last dim), always f32;
    # the result already has batch along lanes -> single lane-dense store.
    y = jax.lax.dot_general(
        w4_ref[...], h,
        dimension_numbers=(((1,), (1,)), ((), ())),
        preferred_element_type=jnp.float32)        # (1, block_b)
    out_ref[0] = (y + b4_ref[...]).astype(out_ref.dtype)


def _fold_bn(w, b, gamma, beta, mean, var, eps=BN_EPS):
    """Fold inference-mode BatchNorm1d into the preceding linear layer."""
    scale = gamma * jax.lax.rsqrt(var + eps)          # (1, out)
    w_f = w * scale                                   # (in, out) * (1, out)
    b_f = (b - mean) * scale + beta                   # (1, out)
    return w_f, b_f


def _default_block_b(B):
    """Batch tile: as large as possible (amortize ~0.35us/step), capped at 2048
    rows (VMEM-safe even on v7x's 64 MiB), and >=2 grid steps when B allows so
    both v7x TensorCores get work."""
    bb = B
    while bb > 2048 and bb % 2 == 0 and (bb // 2) % 8 == 0:
        bb //= 2
    if bb == B and B % 2 == 0 and (B // 2) % 8 == 0:
        bb = B // 2
    return bb


def simple_cnn_forward(x, params, *, block_b=None, use_bf16=False):
    """Fused MLP forward.  x: [B, D] float32.  Returns [B, 1] float32."""
    B, D = x.shape
    if block_b is None:
        block_b = _default_block_b(B)
    assert B % block_b == 0, "batch must be divisible by the batch tile"
    assert block_b == B or block_b % 8 == 0, "batch tile must be sublane-aligned"

    (w1, b1, g1, be1, m1, v1,
     w2, b2, g2, be2, m2, v2,
     w3, b3, w4, b4) = params

    # One-time host-side folding: bn1 into fc1, bn2 into fc2 (exact math).
    w1f, b1f = _fold_bn(w1, b1, g1, be1, m1, v1)
    w2f, b2f = _fold_bn(w2, b2, g2, be2, m2, v2)

    # fc4 weight in row form (1, 64) for the in-kernel NT dot; no padding.
    w4t = w4.T                                          # (1, 64)

    # Optional bf16 matmul operands for fc1..fc3 (x is cast in-kernel; weights
    # are params so a one-time host cast is fine).  fc4 + biases stay f32.
    wdt = jnp.bfloat16 if use_bf16 else jnp.float32
    w1k, w2k, w3k = (w.astype(wdt) for w in (w1f, w2f, w3))
    w4k = w4t.astype(jnp.float32)
    b1k, b2k, b3k, b4k = (b.astype(jnp.float32) for b in (b1f, b2f, b3, b4))

    def whole(arr):
        return pl.BlockSpec(arr.shape, lambda i: (0,) * arr.ndim)

    G = B // block_b
    in_specs = [
        pl.BlockSpec((block_b, D), lambda i: (i, 0)),   # x: tiled over batch, f32
        whole(w1k), whole(b1k),
        whole(w2k), whole(b2k),
        whole(w3k), whole(b3k),
        whole(w4k), whole(b4k),
    ]
    # Lane-packed output: one (1, block_b) row per grid step; block equals the
    # array's trailing dims so the store is a single lane-dense vst.
    out_spec = pl.BlockSpec((1, 1, block_b), lambda i: (i, 0, 0))

    out = pl.pallas_call(
        _mlp_kernel,
        out_shape=jax.ShapeDtypeStruct((G, 1, block_b), jnp.float32),
        grid_spec=pltpu.PrefetchScalarGridSpec(
            num_scalar_prefetch=0,
            grid=(G,),
            in_specs=in_specs,
            out_specs=out_spec,
        ),
        compiler_params=pltpu.CompilerParams(
            dimension_semantics=("parallel",),
            vmem_limit_bytes=32 * 1024 * 1024,
        ),
    )(x, w1k, b1k, w2k, b2k, w3k, b3k, w4k, b4k)

    # Row-major reshape matches the batch-tile index_map: element (g, 0, l)
    # is batch row g*block_b + l.
    return out.reshape(B, 1)


def init_params(key, input_dim):
    """Deterministic synthetic parameters (same shapes as the PyTorch module)."""
    dims = [(input_dim, 256), (256, 128), (128, 64), (64, 1)]
    keys = jax.random.split(key, 16)
    ki = iter(range(16))

    def linear(k_w, k_b, d_in, d_out):
        bound = 1.0 / jnp.sqrt(jnp.float32(d_in))
        w = jax.random.uniform(k_w, (d_in, d_out), jnp.float32, -bound, bound)
        b = jax.random.uniform(k_b, (1, d_out), jnp.float32, -bound, bound)
        return w, b

    w1, b1 = linear(keys[next(ki)], keys[next(ki)], *dims[0])
    w2, b2 = linear(keys[next(ki)], keys[next(ki)], *dims[1])
    w3, b3 = linear(keys[next(ki)], keys[next(ki)], *dims[2])
    w4, b4 = linear(keys[next(ki)], keys[next(ki)], *dims[3])

    def bn(k_g, k_b, d):
        gamma = 1.0 + 0.1 * jax.random.normal(k_g, (1, d), jnp.float32)
        beta = 0.1 * jax.random.normal(k_b, (1, d), jnp.float32)
        mean = jnp.zeros((1, d), jnp.float32)    # PyTorch default running_mean
        var = jnp.ones((1, d), jnp.float32)      # PyTorch default running_var
        return gamma, beta, mean, var

    g1, be1, m1, v1 = bn(keys[next(ki)], keys[next(ki)], 256)
    g2, be2, m2, v2 = bn(keys[next(ki)], keys[next(ki)], 128)

    return (w1, b1, g1, be1, m1, v1,
            w2, b2, g2, be2, m2, v2,
            w3, b3, w4, b4)


def reference_forward(x, params):
    """Pure-JAX f32 reference with the original (unfolded) BN math."""
    (w1, b1, g1, be1, m1, v1,
     w2, b2, g2, be2, m2, v2,
     w3, b3, w4, b4) = params
    h = x @ w1 + b1
    h = (h - m1) / jnp.sqrt(v1 + BN_EPS) * g1 + be1
    h = jnp.maximum(h, 0.0)
    h = h @ w2 + b2
    h = (h - m2) / jnp.sqrt(v2 + BN_EPS) * g2 + be2
    h = jnp.maximum(h, 0.0)
    h = jnp.maximum(h @ w3 + b3, 0.0)
    return h @ w4 + b4


if __name__ == "__main__":
    key = jax.random.PRNGKey(0)
    k_x, k_p = jax.random.split(key)

    batch, input_dim = 256, 32
    x = jax.random.normal(k_x, (batch, input_dim), jnp.float32)
    params = init_params(k_p, input_dim)

    # Default tile picker gives block_b=128 -> grid=(2,): exercises the batch
    # tiled pipeline and the lane-packed output path with >=2 parallel steps.
    out_f32 = simple_cnn_forward(x, params)                   # f32 operands
    out_bf16 = simple_cnn_forward(x, params, use_bf16=True)   # bf16 MXU operands
    jax.block_until_ready((out_f32, out_bf16))

    ref = reference_forward(x, params)
    assert out_f32.shape == (batch, 1) and out_bf16.shape == (batch, 1)
    # f32 path: BN fold is exact; tolerance leaves margin for MXU pass order.
    assert jnp.allclose(out_f32, ref, atol=2e-2, rtol=2e-2), "f32 mismatch vs reference"
    # bf16 operands re-quantize activations per layer -> looser tolerance.
    assert jnp.allclose(out_bf16, ref, atol=1e-1, rtol=1e-1), "bf16 mismatch vs reference"

    print("KERNEL_OK")
</pallas_src>

<mosaic_0001>
module attributes {stable_mosaic.version = 11 : i64} {
  func.func @_mlp_kernel(%arg0: i32, %arg1: memref<128x32xf32, #tpu.memory_space<vmem>>, %arg2: memref<32x256xf32, #tpu.memory_space<vmem>>, %arg3: memref<1x256xf32, #tpu.memory_space<vmem>>, %arg4: memref<256x128xf32, #tpu.memory_space<vmem>>, %arg5: memref<1x128xf32, #tpu.memory_space<vmem>>, %arg6: memref<128x64xf32, #tpu.memory_space<vmem>>, %arg7: memref<1x64xf32, #tpu.memory_space<vmem>>, %arg8: memref<1x64xf32, #tpu.memory_space<vmem>>, %arg9: memref<1x1xf32, #tpu.memory_space<vmem>>, %arg10: memref<1x1x128xf32, #tpu.memory_space<vmem>>) attributes {dimension_semantics = [#tpu.dimension_semantics<parallel>], iteration_bounds = array<i64: 2>, scalar_prefetch = 0 : i64, scratch_operands = 0 : i64, tpu.core_type = #tpu.core_type<tc>, window_params = [{transform_indices = @transform_0, window_bounds = array<i64: 128, 32>}, {pipeline_mode = #tpu.pipeline_mode<synchronous>, transform_indices = @transform_1, window_bounds = array<i64: 32, 256>}, {pipeline_mode = #tpu.pipeline_mode<synchronous>, transform_indices = @transform_2, window_bounds = array<i64: 1, 256>}, {pipeline_mode = #tpu.pipeline_mode<synchronous>, transform_indices = @transform_3, window_bounds = array<i64: 256, 128>}, {pipeline_mode = #tpu.pipeline_mode<synchronous>, transform_indices = @transform_4, window_bounds = array<i64: 1, 128>}, {pipeline_mode = #tpu.pipeline_mode<synchronous>, transform_indices = @transform_5, window_bounds = array<i64: 128, 64>}, {pipeline_mode = #tpu.pipeline_mode<synchronous>, transform_indices = @transform_6, window_bounds = array<i64: 1, 64>}, {pipeline_mode = #tpu.pipeline_mode<synchronous>, transform_indices = @transform_7, window_bounds = array<i64: 1, 64>}, {pipeline_mode = #tpu.pipeline_mode<synchronous>, transform_indices = @transform_8, window_bounds = array<i64: 1, 1>}, {transform_indices = @transform_9, window_bounds = array<i64: 1, 1, 128>}]} {
    %c0 = arith.constant 0 : index
    %c0_0 = arith.constant 0 : index
    %0 = vector.load %arg1[%c0, %c0_0] : memref<128x32xf32, #tpu.memory_space<vmem>>, vector<128x32xf32>
    %c0_1 = arith.constant 0 : index
    %c0_2 = arith.constant 0 : index
    %1 = vector.load %arg2[%c0_1, %c0_2] : memref<32x256xf32, #tpu.memory_space<vmem>>, vector<32x256xf32>
    %cst = arith.constant dense<0.000000e+00> : vector<128x256xf32>
    %2 = tpu.matmul %0, %1, %cst {dimension_numbers = #tpu.dot_dimension_numbers<[1], [0], [0], [1], [0, 0, 1, 1], [], []>} : vector<128x32xf32>, vector<32x256xf32>, vector<128x256xf32> -> vector<128x256xf32>
    %c0_3 = arith.constant 0 : index
    %c0_4 = arith.constant 0 : index
    %3 = vector.load %arg3[%c0_3, %c0_4] : memref<1x256xf32, #tpu.memory_space<vmem>>, vector<1x256xf32>
    %4 = vector.broadcast %3 : vector<1x256xf32> to vector<128x256xf32>
    %5 = arith.addf %2, %4 : vector<128x256xf32>
    %cst_5 = arith.constant 0.000000e+00 : f32
    %6 = vector.broadcast %cst_5 : f32 to vector<128x256xf32>
    %7 = arith.maximumf %5, %6 : vector<128x256xf32>
    %c0_6 = arith.constant 0 : index
    %c0_7 = arith.constant 0 : index
    %8 = vector.load %arg4[%c0_6, %c0_7] : memref<256x128xf32, #tpu.memory_space<vmem>>, vector<256x128xf32>
    %cst_8 = arith.constant dense<0.000000e+00> : vector<128x128xf32>
    %9 = tpu.matmul %7, %8, %cst_8 {dimension_numbers = #tpu.dot_dimension_numbers<[1], [0], [0], [1], [0, 0, 1, 1], [], []>} : vector<128x256xf32>, vector<256x128xf32>, vector<128x128xf32> -> vector<128x128xf32>
    %c0_9 = arith.constant 0 : index
    %c0_10 = arith.constant 0 : index
    %10 = vector.load %arg5[%c0_9, %c0_10] : memref<1x128xf32, #tpu.memory_space<vmem>>, vector<1x128xf32>
    %11 = vector.broadcast %10 : vector<1x128xf32> to vector<128x128xf32>
    %12 = arith.addf %9, %11 : vector<128x128xf32>
    %cst_11 = arith.constant 0.000000e+00 : f32
    %13 = vector.broadcast %cst_11 : f32 to vector<128x128xf32>
    %14 = arith.maximumf %12, %13 : vector<128x128xf32>
    %c0_12 = arith.constant 0 : index
    %c0_13 = arith.constant 0 : index
    %15 = vector.load %arg6[%c0_12, %c0_13] : memref<128x64xf32, #tpu.memory_space<vmem>>, vector<128x64xf32>
    %cst_14 = arith.constant dense<0.000000e+00> : vector<128x64xf32>
    %16 = tpu.matmul %14, %15, %cst_14 {dimension_numbers = #tpu.dot_dimension_numbers<[1], [0], [0], [1], [0, 0, 1, 1], [], []>} : vector<128x128xf32>, vector<128x64xf32>, vector<128x64xf32> -> vector<128x64xf32>
    %c0_15 = arith.constant 0 : index
    %c0_16 = arith.constant 0 : index
    %17 = vector.load %arg7[%c0_15, %c0_16] : memref<1x64xf32, #tpu.memory_space<vmem>>, vector<1x64xf32>
    %18 = vector.broadcast %17 : vector<1x64xf32> to vector<128x64xf32>
    %19 = arith.addf %16, %18 : vector<128x64xf32>
    %cst_17 = arith.constant 0.000000e+00 : f32
    %20 = vector.broadcast %cst_17 : f32 to vector<128x64xf32>
    %21 = arith.maximumf %19, %20 : vector<128x64xf32>
    %c0_18 = arith.constant 0 : index
    %c0_19 = arith.constant 0 : index
    %22 = vector.load %arg8[%c0_18, %c0_19] : memref<1x64xf32, #tpu.memory_space<vmem>>, vector<1x64xf32>
    %cst_20 = arith.constant dense<0.000000e+00> : vector<1x128xf32>
    %23 = tpu.matmul %22, %21, %cst_20 {dimension_numbers = #tpu.dot_dimension_numbers<[1], [1], [0], [0], [0, 0, 1, 0], [], []>} : vector<1x64xf32>, vector<128x64xf32>, vector<1x128xf32> -> vector<1x128xf32>
    %c0_21 = arith.constant 0 : index
    %c0_22 = arith.constant 0 : index
    %24 = vector.load %arg9[%c0_21, %c0_22] : memref<1x1xf32, #tpu.memory_space<vmem>>, vector<1x1xf32>
    %25 = vector.broadcast %24 : vector<1x1xf32> to vector<1x128xf32>
    %26 = arith.addf %23, %25 : vector<1x128xf32>
    %c0_23 = arith.constant 0 : index
    %c0_24 = arith.constant 0 : index
    %c0_25 = arith.constant 0 : index
    %27 = vector.load %arg10[%c0_23, %c0_24, %c0_25] : memref<1x1x128xf32, #tpu.memory_space<vmem>>, vector<1x1x128xf32>
    %28 = vector.shape_cast %27 : vector<1x1x128xf32> to vector<1x128xf32>
    %29 = vector.shape_cast %26 : vector<1x128xf32> to vector<1x1x128xf32>
    tpu.vector_store %arg10[%c0_23, %c0_24, %c0_25], %29 {strides = array<i32>} : memref<1x1x128xf32, #tpu.memory_space<vmem>>, vector<1x1x128xf32>,
    return
  }
  func.func @transform_0(%arg0: i32) -> (i32, i32) {
    %c0_i32 = arith.constant 0 : i32
    %c0_i32_0 = arith.constant 0 : i32
    return %arg0, %c0_i32 : i32, i32
  }
  func.func @transform_1(%arg0: i32) -> (i32, i32) {
    %c0_i32 = arith.constant 0 : i32
    %c0_i32_0 = arith.constant 0 : i32
    %c0_i32_1 = arith.constant 0 : i32
    return %c0_i32, %c0_i32_0 : i32, i32
  }
  func.func @transform_2(%arg0: i32) -> (i32, i32) {
    %c0_i32 = arith.constant 0 : i32
    %c0_i32_0 = arith.constant 0 : i32
    %c0_i32_1 = arith.constant 0 : i32
    return %c0_i32, %c0_i32_0 : i32, i32
  }
  func.func @transform_3(%arg0: i32) -> (i32, i32) {
    %c0_i32 = arith.constant 0 : i32
    %c0_i32_0 = arith.constant 0 : i32
    %c0_i32_1 = arith.constant 0 : i32
    return %c0_i32, %c0_i32_0 : i32, i32
  }
  func.func @transform_4(%arg0: i32) -> (i32, i32) {
    %c0_i32 = arith.constant 0 : i32
    %c0_i32_0 = arith.constant 0 : i32
    %c0_i32_1 = arith.constant 0 : i32
    return %c0_i32, %c0_i32_0 : i32, i32
  }
  func.func @transform_5(%arg0: i32) -> (i32, i32) {
    %c0_i32 = arith.constant 0 : i32
    %c0_i32_0 = arith.constant 0 : i32
    %c0_i32_1 = arith.constant 0 : i32
    return %c0_i32, %c0_i32_0 : i32, i32
  }
  func.func @transform_6(%arg0: i32) -> (i32, i32) {
    %c0_i32 = arith.constant 0 : i32
    %c0_i32_0 = arith.constant 0 : i32
    %c0_i32_1 = arith.constant 0 : i32
    return %c0_i32, %c0_i32_0 : i32, i32
  }
  func.func @transform_7(%arg0: i32) -> (i32, i32) {
    %c0_i32 = arith.constant 0 : i32
    %c0_i32_0 = arith.constant 0 : i32
    %c0_i32_1 = arith.constant 0 : i32
    return %c0_i32, %c0_i32_0 : i32, i32
  }
  func.func @transform_8(%arg0: i32) -> (i32, i32) {
    %c0_i32 = arith.constant 0 : i32
    %c0_i32_0 = arith.constant 0 : i32
    %c0_i32_1 = arith.constant 0 : i32
    return %c0_i32, %c0_i32_0 : i32, i32
  }
  func.func @transform_9(%arg0: i32) -> (i32, i32, i32) {
    %c0_i32 = arith.constant 0 : i32
    %c0_i32_0 = arith.constant 0 : i32
    %c0_i32_1 = arith.constant 0 : i32
    return %arg0, %c0_i32, %c0_i32_0 : i32, i32, i32
  }
}

</mosaic_0001>

<llo_original>
// kernel: tpu_custom_call.1
$region0: #{tpu_custom_call.1}
  #allocation0 [shape = 'u32[]', space=smem, size = 0x4, offset = 0x4, fixed_abs, tag = 'smem constant byte address 0x4 - core index']
  #allocation1 [shape = 'u32[144,128]{1,0:T(1,128)}', space=vmem, size = 0x12000, scoped, tag = 'internal scratch']
  #allocation2 [shape = 'f32[1,1]{1,0:T(1,128)S(1)}', space=vmem, size = 0x200, scoped, tag = 'scoped memory for tpu_custom_call.1']
  %s0 = inlined_call_operand.vmem [shape: f32[256,32], index: 0, kind: input, shape index: {}]
  %s1 = inlined_call_operand.vmem [shape: f32[32,256], index: 1, kind: input, shape index: {}]
  %s2 = inlined_call_operand.vmem [shape: f32[1,256], index: 2, kind: input, shape index: {}]
  %s3 = inlined_call_operand.vmem [shape: f32[256,128], index: 3, kind: input, shape index: {}]
  %s4 = inlined_call_operand.vmem [shape: f32[1,128], index: 4, kind: input, shape index: {}]
  %s5 = inlined_call_operand.vmem [shape: f32[128,64], index: 5, kind: input, shape index: {}]
  %s6 = inlined_call_operand.vmem [shape: f32[1,64], index: 6, kind: input, shape index: {}]
  %s7 = inlined_call_operand.vmem [shape: f32[1,64], index: 7, kind: input, shape index: {}]
  %s8 = inlined_call_operand.<no memory space> [shape: f32[1,1], index: 8, kind: input, shape index: {}]
  %s9 = inlined_call_operand.hbm [shape: f32[2,1,128], index: 9, kind: output, shape index: {}]
  %s10 = sld [smem:[#allocation0]]
  $region69: #{tpu_custom_call.1} parent=0
    _
  %s12 = ssub.s32 1, %s10
  %s13 = scalar_select 0, %s12, %s10
  %v14 = vstv %s8
  %15 = vst [vmem:[#allocation2] sm:$0x1] %v14
  $region1: #{tpu_custom_call.1} parent=0
    #allocation3 [shape = 'u8[1024]{0}', space=vmem, size = 0x400, scoped, tag = 'output window, operand 0']
    #allocation4 [shape = 's32[2]{0}', space=sflag, size = 0x8, scoped, tag = 'scoped memory for tpu_custom_call.1']
    %16 = vsyncpa [#allocation4], 0
    %s17 = scalar_lea.sflag [#allocation4], 1
    %18 = vsyncpa %s17, 0
    loop: start=0, step=1, limit=4
    $region2: #{tpu_custom_call.1} parent=1 // loop_pre_header
      _
    $region3: #{tpu_custom_call.1} parent=1 // loop_header
      %s20 = sphi 0, %s24
      %p21 = scmp.ge.s32.totalorder %s20, 4
      %s30 = sphi 0, %s32
      %s33 = sphi 0, %s30
      %s34 = sphi 0, %s33
      %s50 = sphi 0, %s34
      %s54 = sphi 0, %s54
      %s56 = sphi 0, %s54
      %s57 = sphi 0, %s56
      %s71 = sphi 0, %s57
      %s75 = sphi 0, %s75
      %s77 = sphi 0, %s75
      %s78 = sphi 0, %s77
      %s92 = sphi 0, %s78
      %s96 = sphi 0, %s96
      %s98 = sphi 0, %s96
      %s99 = sphi 0, %s98
      %s113 = sphi 0, %s99
      %s117 = sphi 0, %s117
      %s119 = sphi 0, %s117
      %s120 = sphi 0, %s119
      %s134 = sphi 0, %s120
      %s138 = sphi 0, %s138
      %s140 = sphi 0, %s138
      %s141 = sphi 0, %s140
      %s155 = sphi 0, %s141
      %s159 = sphi 0, %s159
      %s161 = sphi 0, %s159
      %s162 = sphi 0, %s161
      %s176 = sphi 0, %s162
      %s180 = sphi 0, %s180
      %s182 = sphi 0, %s180
      %s183 = sphi 0, %s182
      %s197 = sphi 0, %s183
      %s201 = sphi 0, %s201
      %s203 = sphi 0, %s201
      %s204 = sphi 0, %s203
      %s218 = sphi 0, %s204
      %s224 = sphi 0, %s226
      %s227 = sphi 0, %s224
      %s228 = sphi 0, %s227
      %s244 = sphi 0, %s228
    $region4: #{tpu_custom_call.1} parent=1 // loop_header_branch
      %23 = sbr.rel (%p21) target = $region8
    $region5: #{tpu_custom_call.1} parent=1 // loop_body
      %s25 = ssub.s32 %s20, 1
      %s26 = ssub.s32 %s20, 2
      %s27 = sadd.s32 %s20, 1
      %s28 = ssub.s32 %s20, %s27
      %p29 = scmp.eq.s32.totalorder %s28, 0
      %s31 = sadd.s32 %s30, 1
      %s32 = scalar_select %p29, %s30, %s31
      %p35 = pneg %p29
      %p36 = scmp.eq.s32.totalorder %s20, 1
      %p37 = por %p35, %p36
      %p38 = scmp.ne.s32.totalorder %s30, %s33
      %p39 = scmp.eq.s32.totalorder %s20, 0
      %p40 = por %p38, %p39
      %p41 = scmp.ne.s32.totalorder %s30, %s33
      %p42 = scmp.eq.s32.totalorder %s25, 1
      %p43 = por %p41, %p42
      %p44 = scmp.ne.s32.totalorder %s33, %s34
      %p45 = scmp.eq.s32.totalorder %s25, 0
      %p46 = por %p44, %p45
      %p47 = scmp.ne.s32.totalorder %s33, %s34
      %p48 = scmp.eq.s32.totalorder %s26, 1
      %p49 = por %p47, %p48
      %p51 = scmp.ne.s32.totalorder %s34, %s50
      %p52 = scmp.eq.s32.totalorder %s26, 0
      %p53 = por %p51, %p52
      %s55 = sadd.s32 %s54, 1
      %p58 = scmp.eq.s32.totalorder %s20, 1
      %p59 = scmp.ne.s32.totalorder %s54, %s56
      %p60 = scmp.eq.s32.totalorder %s20, 0
      %p61 = por %p59, %p60
      %p62 = scmp.ne.s32.totalorder %s54, %s56
      %p63 = scmp.eq.s32.totalorder %s25, 1
      %p64 = por %p62, %p63
      %p65 = scmp.ne.s32.totalorder %s56, %s57
      %p66 = scmp.eq.s32.totalorder %s25, 0
      %p67 = por %p65, %p66
      %p68 = scmp.ne.s32.totalorder %s56, %s57
      %p69 = scmp.eq.s32.totalorder %s26, 1
      %p70 = por %p68, %p69
      %p72 = scmp.ne.s32.totalorder %s57, %s71
      %p73 = scmp.eq.s32.totalorder %s26, 0
      %p74 = por %p72, %p73
      %s76 = sadd.s32 %s75, 1
      %p79 = scmp.eq.s32.totalorder %s20, 1
      %p80 = scmp.ne.s32.totalorder %s75, %s77
      %p81 = scmp.eq.s32.totalorder %s20, 0
      %p82 = por %p80, %p81
      %p83 = scmp.ne.s32.totalorder %s75, %s77
      %p84 = scmp.eq.s32.totalorder %s25, 1
      %p85 = por %p83, %p84
      %p86 = scmp.ne.s32.totalorder %s77, %s78
      %p87 = scmp.eq.s32.totalorder %s25, 0
      %p88 = por %p86, %p87
      %p89 = scmp.ne.s32.totalorder %s77, %s78
      %p90 = scmp.eq.s32.totalorder %s26, 1
      %p91 = por %p89, %p90
      %p93 = scmp.ne.s32.totalorder %s78, %s92
      %p94 = scmp.eq.s32.totalorder %s26, 0
      %p95 = por %p93, %p94
      %s97 = sadd.s32 %s96, 1
      %p100 = scmp.eq.s32.totalorder %s20, 1
      %p101 = scmp.ne.s32.totalorder %s96, %s98
      %p102 = scmp.eq.s32.totalorder %s20, 0
      %p103 = por %p101, %p102
      %p104 = scmp.ne.s32.totalorder %s96, %s98
      %p105 = scmp.eq.s32.totalorder %s25, 1
      %p106 = por %p104, %p105
      %p107 = scmp.ne.s32.totalorder %s98, %s99
      %p108 = scmp.eq.s32.totalorder %s25, 0
      %p109 = por %p107, %p108
      %p110 = scmp.ne.s32.totalorder %s98, %s99
      %p111 = scmp.eq.s32.totalorder %s26, 1
      %p112 = por %p110, %p111
      %p114 = scmp.ne.s32.totalorder %s99, %s113
      %p115 = scmp.eq.s32.totalorder %s26, 0
      %p116 = por %p114, %p115
      %s118 = sadd.s32 %s117, 1
      %p121 = scmp.eq.s32.totalorder %s20, 1
      %p122 = scmp.ne.s32.totalorder %s117, %s119
      %p123 = scmp.eq.s32.totalorder %s20, 0
      %p124 = por %p122, %p123
      %p125 = scmp.ne.s32.totalorder %s117, %s119
      %p126 = scmp.eq.s32.totalorder %s25, 1
      %p127 = por %p125, %p126
      %p128 = scmp.ne.s32.totalorder %s119, %s120
      %p129 = scmp.eq.s32.totalorder %s25, 0
      %p130 = por %p128, %p129
      %p131 = scmp.ne.s32.totalorder %s119, %s120
      %p132 = scmp.eq.s32.totalorder %s26, 1
      %p133 = por %p131, %p132
      %p135 = scmp.ne.s32.totalorder %s120, %s134
      %p136 = scmp.eq.s32.totalorder %s26, 0
      %p137 = por %p135, %p136
      %s139 = sadd.s32 %s138, 1
      %p142 = scmp.eq.s32.totalorder %s20, 1
      %p143 = scmp.ne.s32.totalorder %s138, %s140
      %p144 = scmp.eq.s32.totalorder %s20, 0
      %p145 = por %p143, %p144
      %p146 = scmp.ne.s32.totalorder %s138, %s140
      %p147 = scmp.eq.s32.totalorder %s25, 1
      %p148 = por %p146, %p147
      %p149 = scmp.ne.s32.totalorder %s140, %s141
      %p150 = scmp.eq.s32.totalorder %s25, 0
      %p151 = por %p149, %p150
      %p152 = scmp.ne.s32.totalorder %s140, %s141
      %p153 = scmp.eq.s32.totalorder %s26, 1
      %p154 = por %p152, %p153
      %p156 = scmp.ne.s32.totalorder %s141, %s155
      %p157 = scmp.eq.s32.totalorder %s26, 0
      %p158 = por %p156, %p157
      %s160 = sadd.s32 %s159, 1
      %p163 = scmp.eq.s32.totalorder %s20, 1
      %p164 = scmp.ne.s32.totalorder %s159, %s161
      %p165 = scmp.eq.s32.totalorder %s20, 0
      %p166 = por %p164, %p165
      %p167 = scmp.ne.s32.totalorder %s159, %s161
      %p168 = scmp.eq.s32.totalorder %s25, 1
      %p169 = por %p167, %p168
      %p170 = scmp.ne.s32.totalorder %s161, %s162
      %p171 = scmp.eq.s32.totalorder %s25, 0
      %p172 = por %p170, %p171
      %p173 = scmp.ne.s32.totalorder %s161, %s162
      %p174 = scmp.eq.s32.totalorder %s26, 1
      %p175 = por %p173, %p174
      %p177 = scmp.ne.s32.totalorder %s162, %s176
      %p178 = scmp.eq.s32.totalorder %s26, 0
      %p179 = por %p177, %p178
      %s181 = sadd.s32 %s180, 1
      %p184 = scmp.eq.s32.totalorder %s20, 1
      %p185 = scmp.ne.s32.totalorder %s180, %s182
      %p186 = scmp.eq.s32.totalorder %s20, 0
      %p187 = por %p185, %p186
      %p188 = scmp.ne.s32.totalorder %s180, %s182
      %p189 = scmp.eq.s32.totalorder %s25, 1
      %p190 = por %p188, %p189
      %p191 = scmp.ne.s32.totalorder %s182, %s183
      %p192 = scmp.eq.s32.totalorder %s25, 0
      %p193 = por %p191, %p192
      %p194 = scmp.ne.s32.totalorder %s182, %s183
      %p195 = scmp.eq.s32.totalorder %s26, 1
      %p196 = por %p194, %p195
      %p198 = scmp.ne.s32.totalorder %s183, %s197
      %p199 = scmp.eq.s32.totalorder %s26, 0
      %p200 = por %p198, %p199
      %s202 = sadd.s32 %s201, 1
      %p205 = scmp.eq.s32.totalorder %s20, 1
      %p206 = scmp.ne.s32.totalorder %s201, %s203
      %p207 = scmp.eq.s32.totalorder %s20, 0
      %p208 = por %p206, %p207
      %p209 = scmp.ne.s32.totalorder %s201, %s203
      %p210 = scmp.eq.s32.totalorder %s25, 1
      %p211 = por %p209, %p210
      %p212 = scmp.ne.s32.totalorder %s203, %s204
      %p213 = scmp.eq.s32.totalorder %s25, 0
      %p214 = por %p212, %p213
      %p215 = scmp.ne.s32.totalorder %s203, %s204
      %p216 = scmp.eq.s32.totalorder %s26, 1
      %p217 = por %p215, %p216
      %p219 = scmp.ne.s32.totalorder %s204, %s218
      %p220 = scmp.eq.s32.totalorder %s26, 0
      %p221 = por %p219, %p220
      %s222 = ssub.s32 %s20, %s27
      %p223 = scmp.eq.s32.totalorder %s222, 0
      %s225 = sadd.s32 %s224, 1
      %s226 = scalar_select %p223, %s224, %s225
      %p229 = pneg %p223
      %p230 = scmp.eq.s32.totalorder %s20, 1
      %p231 = por %p229, %p230
      %p232 = scmp.ne.s32.totalorder %s224, %s227
      %p233 = scmp.eq.s32.totalorder %s20, 0
      %p234 = por %p232, %p233
      %p235 = scmp.ne.s32.totalorder %s224, %s227
      %p236 = scmp.eq.s32.totalorder %s25, 1
      %p237 = por %p235, %p236
      %p238 = scmp.ne.s32.totalorder %s227, %s228
      %p239 = scmp.eq.s32.totalorder %s25, 0
      %p240 = por %p238, %p239
      %p241 = scmp.ne.s32.totalorder %s227, %s228
      %p242 = scmp.eq.s32.totalorder %s26, 1
      %p243 = por %p241, %p242
      %p245 = scmp.ne.s32.totalorder %s228, %s244
      %p246 = scmp.eq.s32.totalorder %s26, 0
      %p247 = por %p245, %p246
      %p248 = scmp.le.s32.totalorder 1, %s20
      %p249 = scmp.lt.s32.totalorder %s20, 3
      %p250 = pnand %p248, %p249
      %p251 = pneg %p250
      // Predicated region
      $region9: #{tpu_custom_call.1} parent=5 // pred_check
        _
      $region10: #{tpu_custom_call.1} parent=5 // pred_check_branch
        %253 = sbr.rel (%p250) target = $region12
      $region11: #{tpu_custom_call.1} parent=5 // pred_region
        %s254 = ssub.s32 %s20, 1
        // Predicated region
        $region13: #{tpu_custom_call.1} parent=11 // pred_check
          %p255 = pneg %p67
        $region14: #{tpu_custom_call.1} parent=11 // pred_check_branch
          %257 = sbr.rel (%p255) target = $region16
        $region15: #{tpu_custom_call.1} parent=11 // pred_region
          _
        $region16: #{tpu_custom_call.1} parent=11 // pred_fallthru
          _
        // Predicated region
        $region17: #{tpu_custom_call.1} parent=11 // pred_check
          %p258 = pneg %p88
        $region18: #{tpu_custom_call.1} parent=11 // pred_check_branch
          %260 = sbr.rel (%p258) target = $region20
        $region19: #{tpu_custom_call.1} parent=11 // pred_region
          _
        $region20: #{tpu_custom_call.1} parent=11 // pred_fallthru
          _
        // Predicated region
        $region21: #{tpu_custom_call.1} parent=11 // pred_check
          %p261 = pneg %p109
        $region22: #{tpu_custom_call.1} parent=11 // pred_check_branch
          %263 = sbr.rel (%p261) target = $region24
        $region23: #{tpu_custom_call.1} parent=11 // pred_region
          _
        $region24: #{tpu_custom_call.1} parent=11 // pred_fallthru
          _
        // Predicated region
        $region25: #{tpu_custom_call.1} parent=11 // pred_check
          %p264 = pneg %p130
        $region26: #{tpu_custom_call.1} parent=11 // pred_check_branch
          %266 = sbr.rel (%p264) target = $region28
        $region27: #{tpu_custom_call.1} parent=11 // pred_region
          _
        $region28: #{tpu_custom_call.1} parent=11 // pred_fallthru
          _
        // Predicated region
        $region29: #{tpu_custom_call.1} parent=11 // pred_check
          %p267 = pneg %p151
        $region30: #{tpu_custom_call.1} parent=11 // pred_check_branch
          %269 = sbr.rel (%p267) target = $region32
        $region31: #{tpu_custom_call.1} parent=11 // pred_region
          _
        $region32: #{tpu_custom_call.1} parent=11 // pred_fallthru
          _
        // Predicated region
        $region33: #{tpu_custom_call.1} parent=11 // pred_check
          %p270 = pneg %p172
        $region34: #{tpu_custom_call.1} parent=11 // pred_check_branch
          %272 = sbr.rel (%p270) target = $region36
        $region35: #{tpu_custom_call.1} parent=11 // pred_region
          _
        $region36: #{tpu_custom_call.1} parent=11 // pred_fallthru
          _
        // Predicated region
        $region37: #{tpu_custom_call.1} parent=11 // pred_check
          %p273 = pneg %p193
        $region38: #{tpu_custom_call.1} parent=11 // pred_check_branch
          %275 = sbr.rel (%p273) target = $region40
        $region39: #{tpu_custom_call.1} parent=11 // pred_region
          _
        $region40: #{tpu_custom_call.1} parent=11 // pred_fallthru
          _
        // Predicated region
        $region41: #{tpu_custom_call.1} parent=11 // pred_check
          %p276 = pneg %p214
        $region42: #{tpu_custom_call.1} parent=11 // pred_check_branch
          %278 = sbr.rel (%p276) target = $region44
        $region43: #{tpu_custom_call.1} parent=11 // pred_region
          _
        $region44: #{tpu_custom_call.1} parent=11 // pred_fallthru
          _
      $region12: #{tpu_custom_call.1} parent=5 // pred_fallthru
        _
      %p279 = scmp.lt.s32.totalorder %s20, 2
      // Predicated region
      $region45: #{tpu_custom_call.1} parent=5 // pred_check
        %p280 = pneg %p279
      $region46: #{tpu_custom_call.1} parent=5 // pred_check_branch
        %282 = sbr.rel (%p280) target = $region48
      $region47: #{tpu_custom_call.1} parent=5 // pred_region
        // Predicated region
        $region49: #{tpu_custom_call.1} parent=47 // pred_check
          %p283 = pneg %p40
        $region50: #{tpu_custom_call.1} parent=47 // pred_check_branch
          %285 = sbr.rel (%p283) target = $region52
        $region51: #{tpu_custom_call.1} parent=47 // pred_region
          %s286 = smul.u32 16, %s20
          %p287 = scmp.lt.s32.totalorder %s286, 31
          %s288 = scalar_select %p287, %s286, 31
          %s289 = smul.addr %s288, 8
          %s290 = scalar_lea.vmem %s0, %s289
          %s291 = smul.u32 16, %s20
        $region52: #{tpu_custom_call.1} parent=47 // pred_fallthru
          _
      $region48: #{tpu_custom_call.1} parent=5 // pred_fallthru
        _
      %p292 = scmp.le.s32.totalorder 1, %s20
      %p293 = scmp.lt.s32.totalorder %s20, 3
      %p294 = pnand %p292, %p293
      %p295 = pneg %p294
      // Predicated region
      $region53: #{tpu_custom_call.1} parent=5 // pred_check
        _
      $region54: #{tpu_custom_call.1} parent=5 // pred_check_branch
        %297 = sbr.rel (%p294) target = $region56
      $region55: #{tpu_custom_call.1} parent=5 // pred_region
        %s298 = ssub.s32 %s20, 1
        %s299 = smul.u32 16, %s25
        %p300 = scmp.lt.s32.totalorder %s299, 31
        %s301 = scalar_select %p300, %s299, 31
        %s302 = smul.addr %s301, 8
        %s303 = scalar_lea.vmem %s0, %s302
        %p304 = pneg %p46
        %p305 = pneg %p43
        %p306 = pneg %p67
        %p307 = pneg %p64
        %p308 = pneg %p88
        %p309 = pneg %p85
        %p310 = pneg %p109
        %p311 = pneg %p106
        %p312 = pneg %p130
        %p313 = pneg %p127
        %p314 = pneg %p151
        %p315 = pneg %p148
        %p316 = pneg %p172
        %p317 = pneg %p169
        %p318 = pneg %p193
        %p319 = pneg %p190
        %p320 = pneg %p214
        %p321 = pneg %p211
        %p322 = pneg %p240
        %p323 = pneg %p237
        %s324 = sand.u32 %s227, 1
        %s325 = scalar_lea.sflag [#allocation4], %s324
        %s326 = sand.u32 %s227, 1
        %s327 = scalar_lea.vmem [#allocation3], %s326
        %s328 = smul.u32 16, %s25
        %p329 = scmp.lt.s32.totalorder %s328, 31
        %s330 = scalar_select %p329, %s328, 31
        %s331 = smul.addr %s330, 8
        %s332 = scalar_lea.vmem %s0, %s331
        %s333 = smul.u32 16, %s25
        %v334 = vld [vmem:[%s332] sm:$0xff]
        %v335 = vld [vmem:[%s332 + $0x8] sm:$0xff]
        %v336 = vld [vmem:[%s332 + $0x10] sm:$0xff]
        %v337 = vld [vmem:[%s332 + $0x18] sm:$0xff]
        %v338 = vld [vmem:[%s332 + $0x20] sm:$0xff]
        %v339 = vld [vmem:[%s332 + $0x28] sm:$0xff]
        %v340 = vld [vmem:[%s332 + $0x30] sm:$0xff]
        %v341 = vld [vmem:[%s332 + $0x38] sm:$0xff]
        %v342 = vld [vmem:[%s332 + $0x40] sm:$0xff]
        %v343 = vld [vmem:[%s332 + $0x48] sm:$0xff]
        %v344 = vld [vmem:[%s332 + $0x50] sm:$0xff]
        %v345 = vld [vmem:[%s332 + $0x58] sm:$0xff]
        %v346 = vld [vmem:[%s332 + $0x60] sm:$0xff]
        %v347 = vld [vmem:[%s332 + $0x68] sm:$0xff]
        %v348 = vld [vmem:[%s332 + $0x70] sm:$0xff]
        %v349 = vld [vmem:[%s332 + $0x78] sm:$0xff]
        %v350 = vld [vmem:[%s1] sm:$0xff]
        %v351 = vld [vmem:[%s1 + $0x8] sm:$0xff]
        %v352 = vld [vmem:[%s1 + $0x10] sm:$0xff]
        %v353 = vld [vmem:[%s1 + $0x18] sm:$0xff]
        %v354 = vld [vmem:[%s1 + $0x20] sm:$0xff]
        %v355 = vld [vmem:[%s1 + $0x28] sm:$0xff]
        %v356 = vld [vmem:[%s1 + $0x30] sm:$0xff]
        %v357 = vld [vmem:[%s1 + $0x38] sm:$0xff]
        %v358 = vld [vmem:[%s2] sm:$0x3]
        %v360 = vlaneseq
        %v361 = vshrl.u32 %v360, 7
        %v362 = vsub.s32 0, %v361
        %v363 = vrot.slane %v358, %v362
        %v364 = vlaneseq
        %v365 = vshrl.u32 %v364, 7
        %v366 = vsub.s32 1, %v365
        %v367 = vrot.slane %v358, %v366
        %vm370 = vcmask 261120
        %v372 = vsel %vm370, %v334, 0
        %v375 = vsel %vm370, %v335, 0
        %v378 = vsel %vm370, %v336, 0
        %v381 = vsel %vm370, %v337, 0
        %v384 = vsel %vm370, %v338, 0
        %v387 = vsel %vm370, %v339, 0
        %v390 = vsel %vm370, %v340, 0
        %v393 = vsel %vm370, %v341, 0
        %v396 = vsel %vm370, %v342, 0
        %v399 = vsel %vm370, %v343, 0
        %v402 = vsel %vm370, %v344, 0
        %v405 = vsel %vm370, %v345, 0
        %v408 = vsel %vm370, %v346, 0
        %v411 = vsel %vm370, %v347, 0
        %v414 = vsel %vm370, %v348, 0
        %v417 = vsel %vm370, %v349, 0
        %419 = vmatprep.subr.mxu0 %v351
        %420 = vmatpush1.msra.mxu0 %v350
        %421 = vmatprep.subr.mxu0 %v353
        %422 = vmatpush1.msra.mxu0 %v352
        %423 = vmatprep.subr.mxu0 %v355
        %424 = vmatpush1.msra.mxu0 %v354
        %425 = vmatprep.subr.mxu0 %v357
        %426 = vmatpush1.msra.mxu0 %v356
        %427 = vmatprep.subr.mxu0 0.0
        %428 = vmatpush1.msra.mxu0 0.0
        %429 = vmatprep.subr.mxu0 0.0
        %430 = vmatpush1.msra.mxu0 0.0
        %431 = vmatprep.subr.mxu0 0.0
        %432 = vmatpush1.msra.mxu0 0.0
        %433 = vmatprep.subr.mxu0 0.0
        %434 = vmatpush1.msra.mxu0 0.0
        %435 = vmatprep.subr.mxu0 0.0
        %436 = vmatpush1.msra.mxu0 0.0
        %437 = vmatprep.subr.mxu0 0.0
        %438 = vmatpush1.msra.mxu0 0.0
        %439 = vmatprep.subr.mxu0 0.0
        %440 = vmatpush1.msra.mxu0 0.0
        %441 = vmatprep.subr.mxu0 0.0
        %442 = vmatpush1.msra.mxu0 0.0
        %443 = vmatprep.subr.mxu0 0.0
        %444 = vmatpush1.msra.mxu0 0.0
        %445 = vmatprep.subr.mxu0 0.0
        %446 = vmatpush1.msra.mxu0 0.0
        %447 = vmatprep.subr.mxu0 0.0
        %448 = vmatpush1.msra.mxu0 0.0
        %449 = vmatprep.subr.mxu0 0.0
        %450 = vmatpush1.msra.mxu0 0.0
        %451 = vmatprep.subr.mxu0 0.0
        %452 = vmatpush1.msra.mxu0 0.0
        %453 = vmatprep.subr.mxu0 0.0
        %454 = vmatpush1.msra.mxu0 0.0
        %455 = vmatprep.subr.mxu0 0.0
        %456 = vmatpush1.msra.mxu0 0.0
        %457 = vmatprep.subr.mxu0 0.0
        %458 = vmatpush1.msra.mxu0 0.0
        %459 = vmatprep.subr.mxu0 0.0
        %460 = vmatpush1.msra.mxu0 0.0
        %461 = vmatprep.subr.mxu0 0.0
        %462 = vmatpush1.msra.mxu0 0.0
        %463 = vmatprep.subr.mxu0 0.0
        %464 = vmatpush1.msra.mxu0 0.0
        %465 = vmatprep.subr.mxu0 0.0
        %466 = vmatpush1.msra.mxu0 0.0
        %467 = vmatprep.subr.mxu0 0.0
        %468 = vmatpush1.msra.mxu0 0.0
        %469 = vmatprep.subr.mxu0 0.0
        %470 = vmatpush1.msra.mxu0 0.0
        %471 = vmatprep.subr.mxu0 0.0
        %472 = vmatpush1.msra.mxu0 0.0
        %473 = vmatprep.subr.mxu0 0.0
        %474 = vmatpush1.msra.mxu0 0.0
        %475 = vmatprep.subr.mxu0 0.0
        %476 = vmatpush1.msra.mxu0 0.0
        %477 = vmatprep.subr.mxu0 0.0
        %478 = vmatpush1.msra.mxu0 0.0
        %479 = vmatprep.subr.mxu0 0.0
        %480 = vmatpush1.msra.mxu0 0.0
        %481 = vmatprep.subr.mxu0 0.0
        %482 = vmatpush1.msra.mxu0 0.0
        %483 = vmatprep.mubr.f32.mxu0 0.0
        %484 = vmatmul.mubr.f32.gmra.mrb[0].mxu0 %v372
        %v485 = vpop.f32.mrb[0].mxu0
        %v486 = vadd.f32 %v363, %v485
        %v487 = vpop.f32.mrb[0].mxu0
        %v488 = vadd.f32 %v367, %v487
        %489 = vmatprep.mubr.f32.mxu0 0.0
        %490 = vmatmul.mubr.f32.gmra.mrb[0].mxu0 %v375
        %v491 = vpop.f32.mrb[0].mxu0
        %v492 = vadd.f32 %v363, %v491
        %v493 = vpop.f32.mrb[0].mxu0
        %v494 = vadd.f32 %v367, %v493
        %495 = vmatprep.mubr.f32.mxu0 0.0
        %496 = vmatmul.mubr.f32.gmra.mrb[0].mxu0 %v378
        %v497 = vpop.f32.mrb[0].mxu0
        %v498 = vadd.f32 %v363, %v497
        %v499 = vpop.f32.mrb[0].mxu0
        %v500 = vadd.f32 %v367, %v499
        %501 = vmatprep.mubr.f32.mxu0 0.0
        %502 = vmatmul.mubr.f32.gmra.mrb[0].mxu0 %v381
        %v503 = vpop.f32.mrb[0].mxu0
        %v504 = vadd.f32 %v363, %v503
        %v505 = vpop.f32.mrb[0].mxu0
        %v506 = vadd.f32 %v367, %v505
        %507 = vmatprep.mubr.f32.mxu0 0.0
        %508 = vmatmul.mubr.f32.gmra.mrb[0].mxu0 %v384
        %v509 = vpop.f32.mrb[0].mxu0
        %v510 = vadd.f32 %v363, %v509
        %v511 = vpop.f32.mrb[0].mxu0
        %v512 = vadd.f32 %v367, %v511
        %513 = vmatprep.mubr.f32.mxu0 0.0
        %514 = vmatmul.mubr.f32.gmra.mrb[0].mxu0 %v387
        %v515 = vpop.f32.mrb[0].mxu0
        %v516 = vadd.f32 %v363, %v515
        %v517 = vpop.f32.mrb[0].mxu0
        %v518 = vadd.f32 %v367, %v517
        %519 = vmatprep.mubr.f32.mxu0 0.0
        %520 = vmatmul.mubr.f32.gmra.mrb[0].mxu0 %v390
        %v521 = vpop.f32.mrb[0].mxu0
        %v522 = vadd.f32 %v363, %v521
        %v523 = vpop.f32.mrb[0].mxu0
        %v524 = vadd.f32 %v367, %v523
        %525 = vmatprep.mubr.f32.mxu0 0.0
        %526 = vmatmul.mubr.f32.gmra.mrb[0].mxu0 %v393
        %v527 = vpop.f32.mrb[0].mxu0
        %v528 = vadd.f32 %v363, %v527
        %v529 = vpop.f32.mrb[0].mxu0
        %v530 = vadd.f32 %v367, %v529
        %531 = vmatprep.mubr.f32.mxu0 0.0
        %532 = vmatmul.mubr.f32.gmra.mrb[0].mxu0 %v396
        %v533 = vpop.f32.mrb[0].mxu0
        %v534 = vadd.f32 %v363, %v533
        %v535 = vpop.f32.mrb[0].mxu0
        %v536 = vadd.f32 %v367, %v535
        %537 = vmatprep.mubr.f32.mxu0 0.0
        %538 = vmatmul.mubr.f32.gmra.mrb[0].mxu0 %v399
        %v539 = vpop.f32.mrb[0].mxu0
        %v540 = vadd.f32 %v363, %v539
        %v541 = vpop.f32.mrb[0].mxu0
        %v542 = vadd.f32 %v367, %v541
        %543 = vmatprep.mubr.f32.mxu0 0.0
        %544 = vmatmul.mubr.f32.gmra.mrb[0].mxu0 %v402
        %v545 = vpop.f32.mrb[0].mxu0
        %v546 = vadd.f32 %v363, %v545
        %v547 = vpop.f32.mrb[0].mxu0
        %v548 = vadd.f32 %v367, %v547
        %549 = vmatprep.mubr.f32.mxu0 0.0
        %550 = vmatmul.mubr.f32.gmra.mrb[0].mxu0 %v405
        %v551 = vpop.f32.mrb[0].mxu0
        %v552 = vadd.f32 %v363, %v551
        %v553 = vpop.f32.mrb[0].mxu0
        %v554 = vadd.f32 %v367, %v553
        %555 = vmatprep.mubr.f32.mxu0 0.0
        %556 = vmatmul.mubr.f32.gmra.mrb[0].mxu0 %v408
        %v557 = vpop.f32.mrb[0].mxu0
        %v558 = vadd.f32 %v363, %v557
        %v559 = vpop.f32.mrb[0].mxu0
        %v560 = vadd.f32 %v367, %v559
        %561 = vmatprep.mubr.f32.mxu0 0.0
        %562 = vmatmul.mubr.f32.gmra.mrb[0].mxu0 %v411
        %v563 = vpop.f32.mrb[0].mxu0
        %v564 = vadd.f32 %v363, %v563
        %v565 = vpop.f32.mrb[0].mxu0
        %v566 = vadd.f32 %v367, %v565
        %567 = vmatprep.mubr.f32.mxu0 0.0
        %568 = vmatmul.mubr.f32.gmra.mrb[0].mxu0 %v414
        %v569 = vpop.f32.mrb[0].mxu0
        %v570 = vadd.f32 %v363, %v569
        %v571 = vpop.f32.mrb[0].mxu0
        %v572 = vadd.f32 %v367, %v571
        %573 = vmatprep.mubr.f32.mxu0 0.0
        %574 = vmatmul.mubr.f32.gmra.mrb[0].mxu0 %v417
        %v575 = vpop.f32.mrb[0].mxu0
        %v576 = vadd.f32 %v363, %v575
        %v577 = vpop.f32.mrb[0].mxu0
        %v578 = vadd.f32 %v367, %v577
        %579 = vdwg.mxu0
        %v580 = vmax.f32 %v486, 0.0
        %v581 = vmax.f32 %v488, 0.0
        %v582 = vmax.f32 %v492, 0.0
        %v583 = vmax.f32 %v494, 0.0
        %v584 = vmax.f32 %v498, 0.0
        %v585 = vmax.f32 %v500, 0.0
        %v586 = vmax.f32 %v504, 0.0
        %v587 = vmax.f32 %v506, 0.0
        %v588 = vmax.f32 %v510, 0.0
        %v589 = vmax.f32 %v512, 0.0
        %v590 = vmax.f32 %v516, 0.0
        %v591 = vmax.f32 %v518, 0.0
        %v592 = vmax.f32 %v522, 0.0
        %v593 = vmax.f32 %v524, 0.0
        %v594 = vmax.f32 %v528, 0.0
        %v595 = vmax.f32 %v530, 0.0
        %v596 = vmax.f32 %v534, 0.0
        %v597 = vmax.f32 %v536, 0.0
        %v598 = vmax.f32 %v540, 0.0
        %v599 = vmax.f32 %v542, 0.0
        %v600 = vmax.f32 %v546, 0.0
        %v601 = vmax.f32 %v548, 0.0
        %v602 = vmax.f32 %v552, 0.0
        %v603 = vmax.f32 %v554, 0.0
        %v604 = vmax.f32 %v558, 0.0
        %v605 = vmax.f32 %v560, 0.0
        %v606 = vmax.f32 %v564, 0.0
        %v607 = vmax.f32 %v566, 0.0
        %v608 = vmax.f32 %v570, 0.0
        %v609 = vmax.f32 %v572, 0.0
        %v610 = vmax.f32 %v576, 0.0
        %v611 = vmax.f32 %v578, 0.0
        %v612 = vld [vmem:[%s3] sm:$0xff]
        %v613 = vld [vmem:[%s3 + $0x8] sm:$0xff]
        %v614 = vld [vmem:[%s3 + $0x10] sm:$0xff]
        %v615 = vld [vmem:[%s3 + $0x18] sm:$0xff]
        %v616 = vld [vmem:[%s3 + $0x20] sm:$0xff]
        %v617 = vld [vmem:[%s3 + $0x28] sm:$0xff]
        %v618 = vld [vmem:[%s3 + $0x30] sm:$0xff]
        %v619 = vld [vmem:[%s3 + $0x38] sm:$0xff]
        %v620 = vld [vmem:[%s3 + $0x40] sm:$0xff]
        %v621 = vld [vmem:[%s3 + $0x48] sm:$0xff]
        %v622 = vld [vmem:[%s3 + $0x50] sm:$0xff]
        %v623 = vld [vmem:[%s3 + $0x58] sm:$0xff]
        %v624 = vld [vmem:[%s3 + $0x60] sm:$0xff]
        %v625 = vld [vmem:[%s3 + $0x68] sm:$0xff]
        %v626 = vld [vmem:[%s3 + $0x70] sm:$0xff]
        %v627 = vld [vmem:[%s3 + $0x78] sm:$0xff]
        %v628 = vld [vmem:[%s3 + $0x80] sm:$0xff]
        %v629 = vld [vmem:[%s3 + $0x88] sm:$0xff]
        %v630 = vld [vmem:[%s3 + $0x90] sm:$0xff]
        %v631 = vld [vmem:[%s3 + $0x98] sm:$0xff]
        %v632 = vld [vmem:[%s3 + $0xa0] sm:$0xff]
        %v633 = vld [vmem:[%s3 + $0xa8] sm:$0xff]
        %v634 = vld [vmem:[%s3 + $0xb0] sm:$0xff]
        %v635 = vld [vmem:[%s3 + $0xb8] sm:$0xff]
        %v636 = vld [vmem:[%s3 + $0xc0] sm:$0xff]
        %v637 = vld [vmem:[%s3 + $0xc8] sm:$0xff]
        %v638 = vld [vmem:[%s3 + $0xd0] sm:$0xff]
        %v639 = vld [vmem:[%s3 + $0xd8] sm:$0xff]
        %v640 = vld [vmem:[%s3 + $0xe0] sm:$0xff]
        %v641 = vld [vmem:[%s3 + $0xe8] sm:$0xff]
        %v642 = vld [vmem:[%s3 + $0xf0] sm:$0xff]
        %v643 = vld [vmem:[%s3 + $0xf8] sm:$0xff]
        %v644 = vld [vmem:[%s4] sm:$0x1]
        %v646 = vlaneseq
        %v647 = vshrl.u32 %v646, 7
        %v648 = vsub.s32 0, %v647
        %v649 = vrot.slane %v644, %v648
        %651 = vmatprep.subr.mxu0 0.0
        %652 = vmatpush1.msra.mxu0 %v612
        %653 = vmatprep.subr.mxu0 0.0
        %654 = vmatpush1.msra.mxu0 %v613
        %655 = vmatprep.subr.mxu0 0.0
        %656 = vmatpush1.msra.mxu0 %v614
        %657 = vmatprep.subr.mxu0 0.0
        %658 = vmatpush1.msra.mxu0 %v615
        %659 = vmatprep.subr.mxu0 0.0
        %660 = vmatpush1.msra.mxu0 %v616
        %661 = vmatprep.subr.mxu0 0.0
        %662 = vmatpush1.msra.mxu0 %v617
        %663 = vmatprep.subr.mxu0 0.0
        %664 = vmatpush1.msra.mxu0 %v618
        %665 = vmatprep.subr.mxu0 0.0
        %666 = vmatpush1.msra.mxu0 %v619
        %667 = vmatprep.subr.mxu0 0.0
        %668 = vmatpush1.msra.mxu0 %v620
        %669 = vmatprep.subr.mxu0 0.0
        %670 = vmatpush1.msra.mxu0 %v621
        %671 = vmatprep.subr.mxu0 0.0
        %672 = vmatpush1.msra.mxu0 %v622
        %673 = vmatprep.subr.mxu0 0.0
        %674 = vmatpush1.msra.mxu0 %v623
        %675 = vmatprep.subr.mxu0 0.0
        %676 = vmatpush1.msra.mxu0 %v624
        %677 = vmatprep.subr.mxu0 0.0
        %678 = vmatpush1.msra.mxu0 %v625
        %679 = vmatprep.subr.mxu0 0.0
        %680 = vmatpush1.msra.mxu0 %v626
        %681 = vmatprep.subr.mxu0 0.0
        %682 = vmatpush1.msra.mxu0 %v627
        %683 = vmatprep.subr.mxu0 0.0
        %684 = vmatpush1.msra.mxu0 %v628
        %685 = vmatprep.subr.mxu0 0.0
        %686 = vmatpush1.msra.mxu0 %v629
        %687 = vmatprep.subr.mxu0 0.0
        %688 = vmatpush1.msra.mxu0 %v630
        %689 = vmatprep.subr.mxu0 0.0
        %690 = vmatpush1.msra.mxu0 %v631
        %691 = vmatprep.subr.mxu0 0.0
        %692 = vmatpush1.msra.mxu0 %v632
        %693 = vmatprep.subr.mxu0 0.0
        %694 = vmatpush1.msra.mxu0 %v633
        %695 = vmatprep.subr.mxu0 0.0
        %696 = vmatpush1.msra.mxu0 %v634
        %697 = vmatprep.subr.mxu0 0.0
        %698 = vmatpush1.msra.mxu0 %v635
        %699 = vmatprep.subr.mxu0 0.0
        %700 = vmatpush1.msra.mxu0 %v636
        %701 = vmatprep.subr.mxu0 0.0
        %702 = vmatpush1.msra.mxu0 %v637
        %703 = vmatprep.subr.mxu0 0.0
        %704 = vmatpush1.msra.mxu0 %v638
        %705 = vmatprep.subr.mxu0 0.0
        %706 = vmatpush1.msra.mxu0 %v639
        %707 = vmatprep.subr.mxu0 0.0
        %708 = vmatpush1.msra.mxu0 %v640
        %709 = vmatprep.subr.mxu0 0.0
        %710 = vmatpush1.msra.mxu0 %v641
        %711 = vmatprep.subr.mxu0 0.0
        %712 = vmatpush1.msra.mxu0 %v642
        %713 = vmatprep.subr.mxu0 0.0
        %714 = vmatpush1.msra.mxu0 %v643
        %715 = vmatprep.mubr.f32.mxu0 %v581
        %716 = vmatmul.mubr.f32.gmra.mrb[0].mxu0 %v580
        %v717 = vpop.f32.mrb[0].mxu0
        %v718 = vadd.f32 %v649, %v717
        %v719 = vpop.f32.mrb[0].mxu0
        %720 = vmatprep.mubr.f32.mxu0 %v583
        %721 = vmatmul.mubr.f32.gmra.mrb[0].mxu0 %v582
        %v722 = vpop.f32.mrb[0].mxu0
        %v723 = vadd.f32 %v649, %v722
        %v724 = vpop.f32.mrb[0].mxu0
        %725 = vmatprep.mubr.f32.mxu0 %v585
        %726 = vmatmul.mubr.f32.gmra.mrb[0].mxu0 %v584
        %v727 = vpop.f32.mrb[0].mxu0
        %v728 = vadd.f32 %v649, %v727
        %v729 = vpop.f32.mrb[0].mxu0
        %730 = vmatprep.mubr.f32.mxu0 %v587
        %731 = vmatmul.mubr.f32.gmra.mrb[0].mxu0 %v586
        %v732 = vpop.f32.mrb[0].mxu0
        %v733 = vadd.f32 %v649, %v732
        %v734 = vpop.f32.mrb[0].mxu0
        %735 = vmatprep.mubr.f32.mxu0 %v589
        %736 = vmatmul.mubr.f32.gmra.mrb[0].mxu0 %v588
        %v737 = vpop.f32.mrb[0].mxu0
        %v738 = vadd.f32 %v649, %v737
        %v739 = vpop.f32.mrb[0].mxu0
        %740 = vmatprep.mubr.f32.mxu0 %v591
        %741 = vmatmul.mubr.f32.gmra.mrb[0].mxu0 %v590
        %v742 = vpop.f32.mrb[0].mxu0
        %v743 = vadd.f32 %v649, %v742
        %v744 = vpop.f32.mrb[0].mxu0
        %745 = vmatprep.mubr.f32.mxu0 %v593
        %746 = vmatmul.mubr.f32.gmra.mrb[0].mxu0 %v592
        %v747 = vpop.f32.mrb[0].mxu0
        %v748 = vadd.f32 %v649, %v747
        %v749 = vpop.f32.mrb[0].mxu0
        %750 = vmatprep.mubr.f32.mxu0 %v595
        %751 = vmatmul.mubr.f32.gmra.mrb[0].mxu0 %v594
        %v752 = vpop.f32.mrb[0].mxu0
        %v753 = vadd.f32 %v649, %v752
        %v754 = vpop.f32.mrb[0].mxu0
        %755 = vmatprep.mubr.f32.mxu0 %v597
        %756 = vmatmul.mubr.f32.gmra.mrb[0].mxu0 %v596
        %v757 = vpop.f32.mrb[0].mxu0
        %v758 = vadd.f32 %v649, %v757
        %v759 = vpop.f32.mrb[0].mxu0
        %760 = vmatprep.mubr.f32.mxu0 %v599
        %761 = vmatmul.mubr.f32.gmra.mrb[0].mxu0 %v598
        %v762 = vpop.f32.mrb[0].mxu0
        %v763 = vadd.f32 %v649, %v762
        %v764 = vpop.f32.mrb[0].mxu0
        %765 = vmatprep.mubr.f32.mxu0 %v601
        %766 = vmatmul.mubr.f32.gmra.mrb[0].mxu0 %v600
        %v767 = vpop.f32.mrb[0].mxu0
        %v768 = vadd.f32 %v649, %v767
        %v769 = vpop.f32.mrb[0].mxu0
        %770 = vmatprep.mubr.f32.mxu0 %v603
        %771 = vmatmul.mubr.f32.gmra.mrb[0].mxu0 %v602
        %v772 = vpop.f32.mrb[0].mxu0
        %v773 = vadd.f32 %v649, %v772
        %v774 = vpop.f32.mrb[0].mxu0
        %775 = vmatprep.mubr.f32.mxu0 %v605
        %776 = vmatmul.mubr.f32.gmra.mrb[0].mxu0 %v604
        %v777 = vpop.f32.mrb[0].mxu0
        %v778 = vadd.f32 %v649, %v777
        %v779 = vpop.f32.mrb[0].mxu0
        %780 = vmatprep.mubr.f32.mxu0 %v607
        %781 = vmatmul.mubr.f32.gmra.mrb[0].mxu0 %v606
        %v782 = vpop.f32.mrb[0].mxu0
        %v783 = vadd.f32 %v649, %v782
        %v784 = vpop.f32.mrb[0].mxu0
        %785 = vmatprep.mubr.f32.mxu0 %v609
        %786 = vmatmul.mubr.f32.gmra.mrb[0].mxu0 %v608
        %v787 = vpop.f32.mrb[0].mxu0
        %v788 = vadd.f32 %v649, %v787
        %v789 = vpop.f32.mrb[0].mxu0
        %790 = vmatprep.mubr.f32.mxu0 %v611
        %791 = vmatmul.mubr.f32.gmra.mrb[0].mxu0 %v610
        %v792 = vpop.f32.mrb[0].mxu0
        %v793 = vadd.f32 %v649, %v792
        %v794 = vpop.f32.mrb[0].mxu0
        %795 = vdwg.mxu0
        %v796 = vmax.f32 %v718, 0.0
        %v797 = vmax.f32 %v723, 0.0
        %v798 = vmax.f32 %v728, 0.0
        %v799 = vmax.f32 %v733, 0.0
        %v800 = vmax.f32 %v738, 0.0
        %v801 = vmax.f32 %v743, 0.0
        %v802 = vmax.f32 %v748, 0.0
        %v803 = vmax.f32 %v753, 0.0
        %v804 = vmax.f32 %v758, 0.0
        %v805 = vmax.f32 %v763, 0.0
        %v806 = vmax.f32 %v768, 0.0
        %v807 = vmax.f32 %v773, 0.0
        %v808 = vmax.f32 %v778, 0.0
        %v809 = vmax.f32 %v783, 0.0
        %v810 = vmax.f32 %v788, 0.0
        %v811 = vmax.f32 %v793, 0.0
        %v812 = vld [vmem:[%s5] sm:$0xff]
        %v813 = vld [vmem:[%s5 + $0x8] sm:$0xff]
        %v814 = vld [vmem:[%s5 + $0x10] sm:$0xff]
        %v815 = vld [vmem:[%s5 + $0x18] sm:$0xff]
        %v816 = vld [vmem:[%s5 + $0x20] sm:$0xff]
        %v817 = vld [vmem:[%s5 + $0x28] sm:$0xff]
        %v818 = vld [vmem:[%s5 + $0x30] sm:$0xff]
        %v819 = vld [vmem:[%s5 + $0x38] sm:$0xff]
        %v820 = vld [vmem:[%s5 + $0x40] sm:$0xff]
        %v821 = vld [vmem:[%s5 + $0x48] sm:$0xff]
        %v822 = vld [vmem:[%s5 + $0x50] sm:$0xff]
        %v823 = vld [vmem:[%s5 + $0x58] sm:$0xff]
        %v824 = vld [vmem:[%s5 + $0x60] sm:$0xff]
        %v825 = vld [vmem:[%s5 + $0x68] sm:$0xff]
        %v826 = vld [vmem:[%s5 + $0x70] sm:$0xff]
        %v827 = vld [vmem:[%s5 + $0x78] sm:$0xff]
        %v828 = vld [vmem:[%s6] sm:$0x1]
        %v830 = vlaneseq
        %v831 = vshrl.u32 %v830, 7
        %v832 = vsub.s32 0, %v831
        %v833 = vrot.slane %v828, %v832
        %835 = vmatprep.subr.mxu0 0.0
        %836 = vmatpush1.msra.mxu0 %v812
        %837 = vmatprep.subr.mxu0 0.0
        %838 = vmatpush1.msra.mxu0 %v813
        %839 = vmatprep.subr.mxu0 0.0
        %840 = vmatpush1.msra.mxu0 %v814
        %841 = vmatprep.subr.mxu0 0.0
        %842 = vmatpush1.msra.mxu0 %v815
        %843 = vmatprep.subr.mxu0 0.0
        %844 = vmatpush1.msra.mxu0 %v816
        %845 = vmatprep.subr.mxu0 0.0
        %846 = vmatpush1.msra.mxu0 %v817
        %847 = vmatprep.subr.mxu0 0.0
        %848 = vmatpush1.msra.mxu0 %v818
        %849 = vmatprep.subr.mxu0 0.0
        %850 = vmatpush1.msra.mxu0 %v819
        %851 = vmatprep.subr.mxu0 0.0
        %852 = vmatpush1.msra.mxu0 %v820
        %853 = vmatprep.subr.mxu0 0.0
        %854 = vmatpush1.msra.mxu0 %v821
        %855 = vmatprep.subr.mxu0 0.0
        %856 = vmatpush1.msra.mxu0 %v822
        %857 = vmatprep.subr.mxu0 0.0
        %858 = vmatpush1.msra.mxu0 %v823
        %859 = vmatprep.subr.mxu0 0.0
        %860 = vmatpush1.msra.mxu0 %v824
        %861 = vmatprep.subr.mxu0 0.0
        %862 = vmatpush1.msra.mxu0 %v825
        %863 = vmatprep.subr.mxu0 0.0
        %864 = vmatpush1.msra.mxu0 %v826
        %865 = vmatprep.subr.mxu0 0.0
        %866 = vmatpush1.msra.mxu0 %v827
        %867 = vmatprep.subr.mxu0 0.0
        %868 = vmatpush1.msra.mxu0 0.0
        %869 = vmatprep.subr.mxu0 0.0
        %870 = vmatpush1.msra.mxu0 0.0
        %871 = vmatprep.subr.mxu0 0.0
        %872 = vmatpush1.msra.mxu0 0.0
        %873 = vmatprep.subr.mxu0 0.0
        %874 = vmatpush1.msra.mxu0 0.0
        %875 = vmatprep.subr.mxu0 0.0
        %876 = vmatpush1.msra.mxu0 0.0
        %877 = vmatprep.subr.mxu0 0.0
        %878 = vmatpush1.msra.mxu0 0.0
        %879 = vmatprep.subr.mxu0 0.0
        %880 = vmatpush1.msra.mxu0 0.0
        %881 = vmatprep.subr.mxu0 0.0
        %882 = vmatpush1.msra.mxu0 0.0
        %883 = vmatprep.subr.mxu0 0.0
        %884 = vmatpush1.msra.mxu0 0.0
        %885 = vmatprep.subr.mxu0 0.0
        %886 = vmatpush1.msra.mxu0 0.0
        %887 = vmatprep.subr.mxu0 0.0
        %888 = vmatpush1.msra.mxu0 0.0
        %889 = vmatprep.subr.mxu0 0.0
        %890 = vmatpush1.msra.mxu0 0.0
        %891 = vmatprep.subr.mxu0 0.0
        %892 = vmatpush1.msra.mxu0 0.0
        %893 = vmatprep.subr.mxu0 0.0
        %894 = vmatpush1.msra.mxu0 0.0
        %895 = vmatprep.subr.mxu0 0.0
        %896 = vmatpush1.msra.mxu0 0.0
        %897 = vmatprep.subr.mxu0 0.0
        %898 = vmatpush1.msra.mxu0 0.0
        %899 = vmatprep.mubr.f32.mxu0 0.0
        %900 = vmatmul.mubr.f32.gmra.mrb[0].mxu0 %v796
        %v901 = vpop.f32.mrb[0].mxu0
        %v902 = vadd.f32 %v833, %v901
        %v903 = vpop.f32.mrb[0].mxu0
        %904 = vmatprep.mubr.f32.mxu0 0.0
        %905 = vmatmul.mubr.f32.gmra.mrb[0].mxu0 %v797
        %v906 = vpop.f32.mrb[0].mxu0
        %v907 = vadd.f32 %v833, %v906
        %v908 = vpop.f32.mrb[0].mxu0
        %909 = vmatprep.mubr.f32.mxu0 0.0
        %910 = vmatmul.mubr.f32.gmra.mrb[0].mxu0 %v798
        %v911 = vpop.f32.mrb[0].mxu0
        %v912 = vadd.f32 %v833, %v911
        %v913 = vpop.f32.mrb[0].mxu0
        %914 = vmatprep.mubr.f32.mxu0 0.0
        %915 = vmatmul.mubr.f32.gmra.mrb[0].mxu0 %v799
        %v916 = vpop.f32.mrb[0].mxu0
        %v917 = vadd.f32 %v833, %v916
        %v918 = vpop.f32.mrb[0].mxu0
        %919 = vmatprep.mubr.f32.mxu0 0.0
        %920 = vmatmul.mubr.f32.gmra.mrb[0].mxu0 %v800
        %v921 = vpop.f32.mrb[0].mxu0
        %v922 = vadd.f32 %v833, %v921
        %v923 = vpop.f32.mrb[0].mxu0
        %924 = vmatprep.mubr.f32.mxu0 0.0
        %925 = vmatmul.mubr.f32.gmra.mrb[0].mxu0 %v801
        %v926 = vpop.f32.mrb[0].mxu0
        %v927 = vadd.f32 %v833, %v926
        %v928 = vpop.f32.mrb[0].mxu0
        %929 = vmatprep.mubr.f32.mxu0 0.0
        %930 = vmatmul.mubr.f32.gmra.mrb[0].mxu0 %v802
        %v931 = vpop.f32.mrb[0].mxu0
        %v932 = vadd.f32 %v833, %v931
        %v933 = vpop.f32.mrb[0].mxu0
        %934 = vmatprep.mubr.f32.mxu0 0.0
        %935 = vmatmul.mubr.f32.gmra.mrb[0].mxu0 %v803
        %v936 = vpop.f32.mrb[0].mxu0
        %v937 = vadd.f32 %v833, %v936
        %v938 = vpop.f32.mrb[0].mxu0
        %939 = vmatprep.mubr.f32.mxu0 0.0
        %940 = vmatmul.mubr.f32.gmra.mrb[0].mxu0 %v804
        %v941 = vpop.f32.mrb[0].mxu0
        %v942 = vadd.f32 %v833, %v941
        %v943 = vpop.f32.mrb[0].mxu0
        %944 = vmatprep.mubr.f32.mxu0 0.0
        %945 = vmatmul.mubr.f32.gmra.mrb[0].mxu0 %v805
        %v946 = vpop.f32.mrb[0].mxu0
        %v947 = vadd.f32 %v833, %v946
        %v948 = vpop.f32.mrb[0].mxu0
        %949 = vmatprep.mubr.f32.mxu0 0.0
        %950 = vmatmul.mubr.f32.gmra.mrb[0].mxu0 %v806
        %v951 = vpop.f32.mrb[0].mxu0
        %v952 = vadd.f32 %v833, %v951
        %v953 = vpop.f32.mrb[0].mxu0
        %954 = vmatprep.mubr.f32.mxu0 0.0
        %955 = vmatmul.mubr.f32.gmra.mrb[0].mxu0 %v807
        %v956 = vpop.f32.mrb[0].mxu0
        %v957 = vadd.f32 %v833, %v956
        %v958 = vpop.f32.mrb[0].mxu0
        %959 = vmatprep.mubr.f32.mxu0 0.0
        %960 = vmatmul.mubr.f32.gmra.mrb[0].mxu0 %v808
        %v961 = vpop.f32.mrb[0].mxu0
        %v962 = vadd.f32 %v833, %v961
        %v963 = vpop.f32.mrb[0].mxu0
        %964 = vmatprep.mubr.f32.mxu0 0.0
        %965 = vmatmul.mubr.f32.gmra.mrb[0].mxu0 %v809
        %v966 = vpop.f32.mrb[0].mxu0
        %v967 = vadd.f32 %v833, %v966
        %v968 = vpop.f32.mrb[0].mxu0
        %969 = vmatprep.mubr.f32.mxu0 0.0
        %970 = vmatmul.mubr.f32.gmra.mrb[0].mxu0 %v810
        %v971 = vpop.f32.mrb[0].mxu0
        %v972 = vadd.f32 %v833, %v971
        %v973 = vpop.f32.mrb[0].mxu0
        %974 = vmatprep.mubr.f32.mxu0 0.0
        %975 = vmatmul.mubr.f32.gmra.mrb[0].mxu0 %v811
        %v976 = vpop.f32.mrb[0].mxu0
        %v977 = vadd.f32 %v833, %v976
        %v978 = vpop.f32.mrb[0].mxu0
        %979 = vdwg.mxu0
        %v980 = vmax.f32 %v902, 0.0
        %v981 = vmax.f32 %v907, 0.0
        %v982 = vmax.f32 %v912, 0.0
        %v983 = vmax.f32 %v917, 0.0
        %v984 = vmax.f32 %v922, 0.0
        %v985 = vmax.f32 %v927, 0.0
        %v986 = vmax.f32 %v932, 0.0
        %v987 = vmax.f32 %v937, 0.0
        %v988 = vmax.f32 %v942, 0.0
        %v989 = vmax.f32 %v947, 0.0
        %v990 = vmax.f32 %v952, 0.0
        %v991 = vmax.f32 %v957, 0.0
        %v992 = vmax.f32 %v962, 0.0
        %v993 = vmax.f32 %v967, 0.0
        %v994 = vmax.f32 %v972, 0.0
        %v995 = vmax.f32 %v977, 0.0
        %v996 = vld [vmem:[%s7] sm:$0x1]
        %v997 = vld [vmem:[#allocation2] sm:$0x1]
        %999 = vset.pattern.permute.xlu0 0
        %1000 = vperm.xlu0 %999, %v997
        %v1001 = vpop.permute.xlu0 %1000
        %v1003 = vlaneseq
        %v1004 = vshrl.u32 %v1003, 7
        %v1005 = vsub.s32 0, %v1004
        %v1006 = vrot.slane %v1001, %v1005
        %vm1007 = vcmask 523264
        %v1009 = vsel %vm1007, %v996, 0
        %v1012 = vsel %vm1007, %v980, 0
        %v1015 = vsel %vm1007, %v981, 0
        %v1018 = vsel %vm1007, %v982, 0
        %v1021 = vsel %vm1007, %v983, 0
        %v1024 = vsel %vm1007, %v984, 0
        %v1027 = vsel %vm1007, %v985, 0
        %v1030 = vsel %vm1007, %v986, 0
        %v1033 = vsel %vm1007, %v987, 0
        %v1036 = vsel %vm1007, %v988, 0
        %v1039 = vsel %vm1007, %v989, 0
        %v1042 = vsel %vm1007, %v990, 0
        %v1045 = vsel %vm1007, %v991, 0
        %v1048 = vsel %vm1007, %v992, 0
        %v1051 = vsel %vm1007, %v993, 0
        %v1054 = vsel %vm1007, %v994, 0
        %v1057 = vsel %vm1007, %v995, 0
        %1059 = vmatprep.subr.mxu0 0.0
        %1060 = vmatpush1.xpose.msra.mxu0 %v1012
        %1061 = vmatprep.subr.mxu0 0.0
        %1062 = vmatpush1.xpose.msra.mxu0 %v1015
        %1063 = vmatprep.subr.mxu0 0.0
        %1064 = vmatpush1.xpose.msra.mxu0 %v1018
        %1065 = vmatprep.subr.mxu0 0.0
        %1066 = vmatpush1.xpose.msra.mxu0 %v1021
        %1067 = vmatprep.subr.mxu0 0.0
        %1068 = vmatpush1.xpose.msra.mxu0 %v1024
        %1069 = vmatprep.subr.mxu0 0.0
        %1070 = vmatpush1.xpose.msra.mxu0 %v1027
        %1071 = vmatprep.subr.mxu0 0.0
        %1072 = vmatpush1.xpose.msra.mxu0 %v1030
        %1073 = vmatprep.subr.mxu0 0.0
        %1074 = vmatpush1.xpose.msra.mxu0 %v1033
        %1075 = vmatprep.subr.mxu0 0.0
        %1076 = vmatpush1.xpose.msra.mxu0 %v1036
        %1077 = vmatprep.subr.mxu0 0.0
        %1078 = vmatpush1.xpose.msra.mxu0 %v1039
        %1079 = vmatprep.subr.mxu0 0.0
        %1080 = vmatpush1.xpose.msra.mxu0 %v1042
        %1081 = vmatprep.subr.mxu0 0.0
        %1082 = vmatpush1.xpose.msra.mxu0 %v1045
        %1083 = vmatprep.subr.mxu0 0.0
        %1084 = vmatpush1.xpose.msra.mxu0 %v1048
        %1085 = vmatprep.subr.mxu0 0.0
        %1086 = vmatpush1.xpose.msra.mxu0 %v1051
        %1087 = vmatprep.subr.mxu0 0.0
        %1088 = vmatpush1.xpose.msra.mxu0 %v1054
        %1089 = vmatprep.subr.mxu0 0.0
        %1090 = vmatpush1.xpose.msra.mxu0 %v1057
        %1091 = vmatprep.subr.mxu0 0.0
        %1092 = vmatpush1.xpose.msra.mxu0 0.0
        %1093 = vmatprep.subr.mxu0 0.0
        %1094 = vmatpush1.xpose.msra.mxu0 0.0
        %1095 = vmatprep.subr.mxu0 0.0
        %1096 = vmatpush1.xpose.msra.mxu0 0.0
        %1097 = vmatprep.subr.mxu0 0.0
        %1098 = vmatpush1.xpose.msra.mxu0 0.0
        %1099 = vmatprep.subr.mxu0 0.0
        %1100 = vmatpush1.xpose.msra.mxu0 0.0
        %1101 = vmatprep.subr.mxu0 0.0
        %1102 = vmatpush1.xpose.msra.mxu0 0.0
        %1103 = vmatprep.subr.mxu0 0.0
        %1104 = vmatpush1.xpose.msra.mxu0 0.0
        %1105 = vmatprep.subr.mxu0 0.0
        %1106 = vmatpush1.xpose.msra.mxu0 0.0
        %1107 = vmatprep.subr.mxu0 0.0
        %1108 = vmatpush1.xpose.msra.mxu0 0.0
        %1109 = vmatprep.subr.mxu0 0.0
        %1110 = vmatpush1.xpose.msra.mxu0 0.0
        %1111 = vmatprep.subr.mxu0 0.0
        %1112 = vmatpush1.xpose.msra.mxu0 0.0
        %1113 = vmatprep.subr.mxu0 0.0
        %1114 = vmatpush1.xpose.msra.mxu0 0.0
        %1115 = vmatprep.subr.mxu0 0.0
        %1116 = vmatpush1.xpose.msra.mxu0 0.0
        %1117 = vmatprep.subr.mxu0 0.0
        %1118 = vmatpush1.xpose.msra.mxu0 0.0
        %1119 = vmatprep.subr.mxu0 0.0
        %1120 = vmatpush1.xpose.msra.mxu0 0.0
        %1121 = vmatprep.subr.mxu0 0.0
        %1122 = vmatpush1.xpose.msra.mxu0 0.0
        %1123 = vmatprep.mubr.f32.mxu0 0.0
        %1124 = vmatmul.mubr.f32.gmra.mrb[0].mxu0 %v1009
        %v1125 = vpop.f32.mrb[0].mxu0
        %v1126 = vadd.f32 %v1006, %v1125
        %v1127 = vpop.f32.mrb[0].mxu0
        %1128 = vdwg.mxu0
        %1129 = vst [vmem:[%s327] sm:$0x1] %v1126
        %s1130 = sand.u32 %s227, 1
        %s1131 = scalar_lea.sflag [#allocation4], %s1130
        %s1132 = sand.u32 %s227, 1
        %s1133 = scalar_lea.vmem [#allocation3], %s1132
        // Predicated region
        $region57: #{tpu_custom_call.1} parent=55 // pred_check
          %p1134 = pneg %p237
        $region58: #{tpu_custom_call.1} parent=55 // pred_check_branch
          %1136 = sbr.rel (%p1134) target = $region60
        $region59: #{tpu_custom_call.1} parent=55 // pred_region
          %s1138 = ssub.s32 16, 16
          %1139 = vsyncadd %s1131, %s1138
          %s1140 = smul.addr %s25, 16
          %s1141 = scalar_lea.hbm %s9, %s1140
          %s1143 = sshll.u32 %s1133, 4
          %s1144 = int_to_ptr.vmem [resolvable:$true] %s1143
          %1146 = dma.vmem_to_hbm [thread:$0]  %s1144, 16, %s1141, %s1131
        $region60: #{tpu_custom_call.1} parent=55 // pred_fallthru
          _
      $region56: #{tpu_custom_call.1} parent=5 // pred_fallthru
        _
      %p1147 = scmp.le.s32.totalorder 2, %s20
      // Predicated region
      $region61: #{tpu_custom_call.1} parent=5 // pred_check
        %p1148 = pneg %p1147
      $region62: #{tpu_custom_call.1} parent=5 // pred_check_branch
        %1150 = sbr.rel (%p1148) target = $region64
      $region63: #{tpu_custom_call.1} parent=5 // pred_region
        %s1151 = ssub.s32 %s20, 2
        // Predicated region
        $region65: #{tpu_custom_call.1} parent=63 // pred_check
          %p1152 = pneg %p243
        $region66: #{tpu_custom_call.1} parent=63 // pred_check_branch
          %1154 = sbr.rel (%p1152) target = $region68
        $region67: #{tpu_custom_call.1} parent=63 // pred_region
          %s1155 = sand.u32 %s228, 1
          %s1156 = scalar_lea.sflag [#allocation4], %s1155
          %s1157 = sand.u32 %s228, 1
          %s1158 = scalar_lea.vmem [#allocation3], %s1157
          %1159 = dma.done %s1156, 16
        $region68: #{tpu_custom_call.1} parent=63 // pred_fallthru
          _
      $region64: #{tpu_custom_call.1} parent=5 // pred_fallthru
        _
    $region6: #{tpu_custom_call.1} parent=1 // loop_footer
      %s24 = sadd.s32 1, %s20
    $region7: #{tpu_custom_call.1} parent=1 // loop_footer_branch
      %19 = sbr.rel target = $region3
    $region8: #{tpu_custom_call.1} parent=1 // loop_exit
      _
    %1160 = vsyncpa [#allocation4], 1
    %s1161 = scalar_lea.sflag [#allocation4], 1
    %1162 = vsyncpa %s1161, 1

</llo_original>
